<compile_context>
chip_gen: v5e
topology: v5e:2x2
jax: 0.10.0
libtpu: 0.0.40
codegen_flags: <defaults>
</compile_context>

<pallas_src>
import jax
import jax.numpy as jnp
from jax.experimental import pallas as pl
from jax.experimental.pallas import tpu as pltpu

IN_FEATURES = 39
HIDDEN = 128
OUT_FEATURES = 24
PAD = 128          # lane-dense padded feature width used for the hidden matmuls
NUM_LAYERS = 4


def mlp_kernel(x_ref, w_ref, b_ref, out_ref, xpad_ref):
    """Fused 4-layer MLP on one (tb, 39) batch tile.

    x_ref    : (tb, 39)       f32 raw input tile (no wrapper-side pad/cast)
    w_ref    : (4, 128, 128)  bf16 weight stack (in x out per layer), VMEM-resident
    b_ref    : (4, 1, 128)    f32 bias stack (padded lanes zero), VMEM-resident
    out_ref  : (tb, 24)       f32 logits (narrow, masked stores -- DMA-bound anyway)
    xpad_ref : (tb, 128)      bf16 scratch: in-kernel cast + lane pad 39 -> 128
    """
    tb = x_ref.shape[0]
    # In-kernel bf16 cast + zero lane-pad (replaces the old wrapper-side XLA pad pass).
    xpad_ref[:, IN_FEATURES:] = jnp.zeros((tb, PAD - IN_FEATURES), jnp.bfloat16)
    xpad_ref[:, :IN_FEATURES] = x_ref[...].astype(jnp.bfloat16)
    h = xpad_ref[...]                                           # (tb, 128) bf16

    for layer in range(NUM_LAYERS - 1):                         # unrolled at trace time
        acc = jnp.dot(h, w_ref[layer], preferred_element_type=jnp.float32)
        acc = acc + b_ref[layer]                                # (1,128) broadcast
        # Intentional precision choice: bf16 activations feeding the MXU, f32 accum.
        h = jnp.maximum(acc, 0.0).astype(jnp.bfloat16)

    logits = jnp.dot(h, w_ref[NUM_LAYERS - 1],
                     preferred_element_type=jnp.float32) + b_ref[NUM_LAYERS - 1]
    out_ref[...] = logits[:, :OUT_FEATURES].astype(out_ref.dtype)


def _round_up(n, m):
    return ((n + m - 1) // m) * m


def neural_network_forward(x, params, *, batch_tile=1024):
    """x: (B, ...) -> nn.Flatten -> (B, 39). Returns (B, 24) f32 logits."""
    w_stack, b_stack = params                        # (4,128,128) bf16, (4,1,128) f32
    B = x.shape[0]
    x = x.reshape(B, -1).astype(jnp.float32)         # nn.Flatten (no other wrapper pass)
    assert x.shape[1] == IN_FEATURES, x.shape

    # Bound batch padding waste to <=7 rows; partial final blocks are masked by Pallas.
    b_pad = max(_round_up(B, 8), 8)
    if b_pad != B:
        x = jnp.pad(x, ((0, b_pad - B), (0, 0)))

    # Batch tile: multiple of 8 (sublane), big enough to amortize the ~0.35 us
    # per-grid-step overhead, but split so the grid has >=2 steps when possible
    # (lets the "parallel" axis feed both TensorCores on v7x).
    tb = min(_round_up(max(batch_tile, 8), 8), b_pad)
    if b_pad >= 16:
        tb = min(tb, _round_up(pl.cdiv(b_pad, 2), 8))
    tb = min(max(tb, 8), 16384)

    grid = (pl.cdiv(b_pad, tb),)

    # Scoped-VMEM guardrail (v5e default is 16 MiB): ~2.8 KiB/row of double-buffered
    # in/out blocks + intermediates/scratch, plus ~0.5 MiB of resident weights.
    cp = dict(dimension_semantics=("parallel",))     # batch tiles are independent
    est_vmem = tb * 2816 + (1 << 20)
    if est_vmem > 12 * 1024 * 1024:
        cp["vmem_limit_bytes"] = min(est_vmem + (4 << 20), 48 * 1024 * 1024)

    out = pl.pallas_call(
        mlp_kernel,
        out_shape=jax.ShapeDtypeStruct((b_pad, OUT_FEATURES), jnp.float32),
        grid=grid,
        in_specs=[
            # Raw (tb, 39) input tile: 39 equals the full last dim, so this block is legal.
            pl.BlockSpec((tb, IN_FEATURES), lambda i: (i, 0)),
            # Constant index_maps: DMA'd once, VMEM-resident across all grid steps.
            pl.BlockSpec((NUM_LAYERS, PAD, PAD), lambda i: (0, 0, 0)),
            pl.BlockSpec((NUM_LAYERS, 1, PAD), lambda i: (0, 0, 0)),
        ],
        # Narrow 24-lane f32 output: 5.3x fewer HBM write bytes than padded 128-lane f32.
        out_specs=pl.BlockSpec((tb, OUT_FEATURES), lambda i: (i, 0)),
        scratch_shapes=[pltpu.VMEM((tb, PAD), jnp.bfloat16)],
        compiler_params=pltpu.CompilerParams(**cp),
    )(x, w_stack, b_stack)

    return out[:B]


def init_params(key):
    """Deterministic init mimicking nn.Linear (uniform +/- 1/sqrt(fan_in)).

    Weights are packed into a single (4, 128, 128) bf16 stack (in_features x out_features
    per layer, zero-padded to 128x128); biases into a (4, 1, 128) f32 stack (zero-padded).
    """
    dims = [(IN_FEATURES, HIDDEN), (HIDDEN, HIDDEN), (HIDDEN, HIDDEN), (HIDDEN, OUT_FEATURES)]
    w_stack = jnp.zeros((NUM_LAYERS, PAD, PAD), jnp.float32)
    b_stack = jnp.zeros((NUM_LAYERS, 1, PAD), jnp.float32)
    for layer, (fan_in, fan_out) in enumerate(dims):
        key, kw, kb = jax.random.split(key, 3)
        bound = 1.0 / jnp.sqrt(jnp.float32(fan_in))
        w = jax.random.uniform(kw, (fan_in, fan_out), jnp.float32, -bound, bound)
        b = jax.random.uniform(kb, (fan_out,), jnp.float32, -bound, bound)
        w_stack = w_stack.at[layer, :fan_in, :fan_out].set(w)
        b_stack = b_stack.at[layer, 0, :fan_out].set(b)
    return w_stack.astype(jnp.bfloat16), b_stack


def reference_forward(x, params):
    """Pure-JAX f32 reference using the same (bf16-rounded) weights, unpadded math."""
    w_stack, b_stack = params
    w = w_stack.astype(jnp.float32)
    dims = [(IN_FEATURES, HIDDEN), (HIDDEN, HIDDEN), (HIDDEN, HIDDEN), (HIDDEN, OUT_FEATURES)]
    h = x.reshape(x.shape[0], -1)
    for layer, (fan_in, fan_out) in enumerate(dims):
        h = h @ w[layer, :fan_in, :fan_out] + b_stack[layer, 0, :fan_out]
        if layer < NUM_LAYERS - 1:
            h = jnp.maximum(h, 0.0)
    return h


if __name__ == "__main__":
    key = jax.random.PRNGKey(0)
    key, kx = jax.random.split(key)
    params = init_params(key)

    # Small single-tile case (B=8).
    B = 8
    x = jax.random.normal(kx, (B, IN_FEATURES), jnp.float32)
    out = jax.block_until_ready(neural_network_forward(x, params))
    ref = reference_forward(x, params)
    assert out.shape == (B, OUT_FEATURES), out.shape
    # bf16 activations/weights with f32 accumulation -> loosened tolerance vs f32 reference.
    assert jnp.allclose(out, ref, atol=5e-2, rtol=5e-2), "mismatch vs reference (B=8)"

    # Multi-step grid with a partial final block (B=200, tile=64 -> grid of 4, masked tail).
    key, kx2 = jax.random.split(key)
    B2 = 200
    x2 = jax.random.normal(kx2, (B2, IN_FEATURES), jnp.float32)
    out2 = jax.block_until_ready(neural_network_forward(x2, params, batch_tile=64))
    ref2 = reference_forward(x2, params)
    assert out2.shape == (B2, OUT_FEATURES), out2.shape
    assert jnp.allclose(out2, ref2, atol=5e-2, rtol=5e-2), "mismatch vs reference (B=200)"

    # Ragged batch (B not a multiple of 8) exercising the <=7-row batch pad path.
    key, kx3 = jax.random.split(key)
    B3 = 13
    x3 = jax.random.normal(kx3, (B3, IN_FEATURES), jnp.float32)
    out3 = jax.block_until_ready(neural_network_forward(x3, params))
    ref3 = reference_forward(x3, params)
    assert out3.shape == (B3, OUT_FEATURES), out3.shape
    assert jnp.allclose(out3, ref3, atol=5e-2, rtol=5e-2), "mismatch vs reference (B=13)"

    print("KERNEL_OK")
</pallas_src>

<mosaic_0001>
module attributes {stable_mosaic.version = 11 : i64} {
  func.func @mlp_kernel(%arg0: i32, %arg1: memref<8x39xf32, #tpu.memory_space<vmem>>, %arg2: memref<4x128x128xbf16, #tpu.memory_space<vmem>>, %arg3: memref<4x1x128xf32, #tpu.memory_space<vmem>>, %arg4: memref<8x24xf32, #tpu.memory_space<vmem>>, %arg5: memref<8x128xbf16, #tpu.memory_space<vmem>>) attributes {dimension_semantics = [#tpu.dimension_semantics<parallel>], iteration_bounds = array<i64: 1>, scalar_prefetch = 0 : i64, scratch_operands = 1 : i64, tpu.core_type = #tpu.core_type<tc>, window_params = [{transform_indices = @transform_0, window_bounds = array<i64: 8, 39>}, {pipeline_mode = #tpu.pipeline_mode<synchronous>, transform_indices = @transform_1, window_bounds = array<i64: 4, 128, 128>}, {pipeline_mode = #tpu.pipeline_mode<synchronous>, transform_indices = @transform_2, window_bounds = array<i64: 4, 1, 128>}, {transform_indices = @transform_3, window_bounds = array<i64: 8, 24>}]} {
    %cst = arith.constant 0.000000e+00 : bf16
    %0 = vector.broadcast %cst : bf16 to vector<8x89xbf16>
    %c0 = arith.constant 0 : index
    %c39 = arith.constant 39 : index
    %1 = vector.load %arg5[%c0, %c39] : memref<8x128xbf16, #tpu.memory_space<vmem>>, vector<8x89xbf16>
    tpu.vector_store %arg5[%c0, %c39], %0 {strides = array<i32>} : memref<8x128xbf16, #tpu.memory_space<vmem>>, vector<8x89xbf16>,
    %c0_0 = arith.constant 0 : index
    %c0_1 = arith.constant 0 : index
    %2 = vector.load %arg1[%c0_0, %c0_1] : memref<8x39xf32, #tpu.memory_space<vmem>>, vector<8x39xf32>
    %3 = arith.truncf %2 : vector<8x39xf32> to vector<8x39xbf16>
    %c0_2 = arith.constant 0 : index
    %c0_3 = arith.constant 0 : index
    %4 = vector.load %arg5[%c0_2, %c0_3] : memref<8x128xbf16, #tpu.memory_space<vmem>>, vector<8x39xbf16>
    tpu.vector_store %arg5[%c0_2, %c0_3], %3 {strides = array<i32>} : memref<8x128xbf16, #tpu.memory_space<vmem>>, vector<8x39xbf16>,
    %c0_4 = arith.constant 0 : index
    %c0_5 = arith.constant 0 : index
    %5 = vector.load %arg5[%c0_4, %c0_5] : memref<8x128xbf16, #tpu.memory_space<vmem>>, vector<8x128xbf16>
    %c0_6 = arith.constant 0 : index
    %c0_7 = arith.constant 0 : index
    %c0_8 = arith.constant 0 : index
    %6 = vector.load %arg2[%c0_6, %c0_7, %c0_8] : memref<4x128x128xbf16, #tpu.memory_space<vmem>>, vector<1x128x128xbf16>
    %7 = vector.shape_cast %6 : vector<1x128x128xbf16> to vector<128x128xbf16>
    %cst_9 = arith.constant dense<0.000000e+00> : vector<8x128xf32>
    %8 = tpu.matmul %5, %7, %cst_9 {dimension_numbers = #tpu.dot_dimension_numbers<[1], [0], [0], [1], [0, 0, 1, 1], [], []>} : vector<8x128xbf16>, vector<128x128xbf16>, vector<8x128xf32> -> vector<8x128xf32>
    %c0_10 = arith.constant 0 : index
    %c0_11 = arith.constant 0 : index
    %c0_12 = arith.constant 0 : index
    %9 = vector.load %arg3[%c0_10, %c0_11, %c0_12] : memref<4x1x128xf32, #tpu.memory_space<vmem>>, vector<1x1x128xf32>
    %10 = vector.shape_cast %9 : vector<1x1x128xf32> to vector<1x128xf32>
    %11 = vector.broadcast %10 : vector<1x128xf32> to vector<8x128xf32>
    %12 = arith.addf %8, %11 : vector<8x128xf32>
    %cst_13 = arith.constant 0.000000e+00 : f32
    %13 = vector.broadcast %cst_13 : f32 to vector<8x128xf32>
    %14 = arith.maximumf %12, %13 : vector<8x128xf32>
    %15 = arith.truncf %14 : vector<8x128xf32> to vector<8x128xbf16>
    %c1 = arith.constant 1 : index
    %c0_14 = arith.constant 0 : index
    %c0_15 = arith.constant 0 : index
    %16 = vector.load %arg2[%c1, %c0_14, %c0_15] : memref<4x128x128xbf16, #tpu.memory_space<vmem>>, vector<1x128x128xbf16>
    %17 = vector.shape_cast %16 : vector<1x128x128xbf16> to vector<128x128xbf16>
    %cst_16 = arith.constant dense<0.000000e+00> : vector<8x128xf32>
    %18 = tpu.matmul %15, %17, %cst_16 {dimension_numbers = #tpu.dot_dimension_numbers<[1], [0], [0], [1], [0, 0, 1, 1], [], []>} : vector<8x128xbf16>, vector<128x128xbf16>, vector<8x128xf32> -> vector<8x128xf32>
    %c1_17 = arith.constant 1 : index
    %c0_18 = arith.constant 0 : index
    %c0_19 = arith.constant 0 : index
    %19 = vector.load %arg3[%c1_17, %c0_18, %c0_19] : memref<4x1x128xf32, #tpu.memory_space<vmem>>, vector<1x1x128xf32>
    %20 = vector.shape_cast %19 : vector<1x1x128xf32> to vector<1x128xf32>
    %21 = vector.broadcast %20 : vector<1x128xf32> to vector<8x128xf32>
    %22 = arith.addf %18, %21 : vector<8x128xf32>
    %cst_20 = arith.constant 0.000000e+00 : f32
    %23 = vector.broadcast %cst_20 : f32 to vector<8x128xf32>
    %24 = arith.maximumf %22, %23 : vector<8x128xf32>
    %25 = arith.truncf %24 : vector<8x128xf32> to vector<8x128xbf16>
    %c2 = arith.constant 2 : index
    %c0_21 = arith.constant 0 : index
    %c0_22 = arith.constant 0 : index
    %26 = vector.load %arg2[%c2, %c0_21, %c0_22] : memref<4x128x128xbf16, #tpu.memory_space<vmem>>, vector<1x128x128xbf16>
    %27 = vector.shape_cast %26 : vector<1x128x128xbf16> to vector<128x128xbf16>
    %cst_23 = arith.constant dense<0.000000e+00> : vector<8x128xf32>
    %28 = tpu.matmul %25, %27, %cst_23 {dimension_numbers = #tpu.dot_dimension_numbers<[1], [0], [0], [1], [0, 0, 1, 1], [], []>} : vector<8x128xbf16>, vector<128x128xbf16>, vector<8x128xf32> -> vector<8x128xf32>
    %c2_24 = arith.constant 2 : index
    %c0_25 = arith.constant 0 : index
    %c0_26 = arith.constant 0 : index
    %29 = vector.load %arg3[%c2_24, %c0_25, %c0_26] : memref<4x1x128xf32, #tpu.memory_space<vmem>>, vector<1x1x128xf32>
    %30 = vector.shape_cast %29 : vector<1x1x128xf32> to vector<1x128xf32>
    %31 = vector.broadcast %30 : vector<1x128xf32> to vector<8x128xf32>
    %32 = arith.addf %28, %31 : vector<8x128xf32>
    %cst_27 = arith.constant 0.000000e+00 : f32
    %33 = vector.broadcast %cst_27 : f32 to vector<8x128xf32>
    %34 = arith.maximumf %32, %33 : vector<8x128xf32>
    %35 = arith.truncf %34 : vector<8x128xf32> to vector<8x128xbf16>
    %c3 = arith.constant 3 : index
    %c0_28 = arith.constant 0 : index
    %c0_29 = arith.constant 0 : index
    %36 = vector.load %arg2[%c3, %c0_28, %c0_29] : memref<4x128x128xbf16, #tpu.memory_space<vmem>>, vector<1x128x128xbf16>
    %37 = vector.shape_cast %36 : vector<1x128x128xbf16> to vector<128x128xbf16>
    %cst_30 = arith.constant dense<0.000000e+00> : vector<8x128xf32>
    %38 = tpu.matmul %35, %37, %cst_30 {dimension_numbers = #tpu.dot_dimension_numbers<[1], [0], [0], [1], [0, 0, 1, 1], [], []>} : vector<8x128xbf16>, vector<128x128xbf16>, vector<8x128xf32> -> vector<8x128xf32>
    %c3_31 = arith.constant 3 : index
    %c0_32 = arith.constant 0 : index
    %c0_33 = arith.constant 0 : index
    %39 = vector.load %arg3[%c3_31, %c0_32, %c0_33] : memref<4x1x128xf32, #tpu.memory_space<vmem>>, vector<1x1x128xf32>
    %40 = vector.shape_cast %39 : vector<1x1x128xf32> to vector<1x128xf32>
    %41 = vector.broadcast %40 : vector<1x128xf32> to vector<8x128xf32>
    %42 = arith.addf %38, %41 : vector<8x128xf32>
    %43 = vector.extract_strided_slice %42 {offsets = [0, 0], sizes = [8, 24], strides = [1, 1]} : vector<8x128xf32> to vector<8x24xf32>
    %c0_34 = arith.constant 0 : index
    %c0_35 = arith.constant 0 : index
    %44 = vector.load %arg4[%c0_34, %c0_35] : memref<8x24xf32, #tpu.memory_space<vmem>>, vector<8x24xf32>
    tpu.vector_store %arg4[%c0_34, %c0_35], %43 {strides = array<i32>} : memref<8x24xf32, #tpu.memory_space<vmem>>, vector<8x24xf32>,
    return
  }
  func.func @transform_0(%arg0: i32) -> (i32, i32) {
    %c0_i32 = arith.constant 0 : i32
    %c0_i32_0 = arith.constant 0 : i32
    return %arg0, %c0_i32 : i32, i32
  }
  func.func @transform_1(%arg0: i32) -> (i32, i32, i32) {
    %c0_i32 = arith.constant 0 : i32
    %c0_i32_0 = arith.constant 0 : i32
    %c0_i32_1 = arith.constant 0 : i32
    %c0_i32_2 = arith.constant 0 : i32
    return %c0_i32, %c0_i32_0, %c0_i32_1 : i32, i32, i32
  }
  func.func @transform_2(%arg0: i32) -> (i32, i32, i32) {
    %c0_i32 = arith.constant 0 : i32
    %c0_i32_0 = arith.constant 0 : i32
    %c0_i32_1 = arith.constant 0 : i32
    %c0_i32_2 = arith.constant 0 : i32
    return %c0_i32, %c0_i32_0, %c0_i32_1 : i32, i32, i32
  }
  func.func @transform_3(%arg0: i32) -> (i32, i32) {
    %c0_i32 = arith.constant 0 : i32
    %c0_i32_0 = arith.constant 0 : i32
    return %arg0, %c0_i32 : i32, i32
  }
}

</mosaic_0001>

<llo_original>
// kernel: tpu_custom_call.1
$region0: #{tpu_custom_call.1}
  #allocation0 [shape = 'u32[]', space=smem, size = 0x4, offset = 0x4, fixed_abs, tag = 'smem constant byte address 0x4 - core index']
  #allocation1 [shape = 'u32[72,128]{1,0:T(1,128)}', space=vmem, size = 0x9000, scoped, tag = 'internal scratch']
  #allocation2 [shape = 'bf16[8,128]{1,0:T(8,128)(2,1)}', space=vmem, size = 0x800, scoped, tag = 'scratch operand']
  %s0 = inlined_call_operand.hbm [shape: f32[8,39], index: 0, kind: input, shape index: {}]
  %s1 = inlined_call_operand.hbm [shape: bf16[4,128,128], index: 1, kind: input, shape index: {}]
  %s2 = inlined_call_operand.hbm [shape: f32[4,1,128], index: 2, kind: input, shape index: {}]
  %s3 = inlined_call_operand.hbm [shape: f32[8,24], index: 3, kind: output, shape index: {}]
  %s4 = sld [smem:[#allocation0]]
  $region34: #{tpu_custom_call.1} parent=0
    _
  %s6 = ssub.s32 1, %s4
  %s7 = scalar_select 0, %s6, %s4
  $region1: #{tpu_custom_call.1} parent=0
    #allocation3 [shape = 'u8[4096]{0}', space=vmem, size = 0x1000, scoped, tag = 'input window, operand 0, single buffered']
    #allocation4 [shape = 's32[1]{0}', space=sflag, size = 0x4, scoped, tag = 'scoped memory for tpu_custom_call.1']
    #allocation5 [shape = 's32[1]{0}', space=sflag, size = 0x4, scoped, tag = 'scoped memory for tpu_custom_call.1']
    #allocation6 [shape = 'u8[131072]{0}', space=vmem, size = 0x20000, scoped, tag = 'input window, operand 1, single buffered']
    #allocation7 [shape = 's32[1]{0}', space=sflag, size = 0x4, scoped, tag = 'scoped memory for tpu_custom_call.1']
    #allocation8 [shape = 'u8[2048]{0}', space=vmem, size = 0x800, scoped, tag = 'input window, operand 2, single buffered']
    #allocation9 [shape = 'u8[4096]{0}', space=vmem, size = 0x1000, scoped, tag = 'output window, operand 0, single buffered']
    %8 = vsyncpa [#allocation4], 0
    %9 = vsyncpa [#allocation7], 0
    %10 = vsyncpa [#allocation5], 0
    // Predicated region
    $region2: #{tpu_custom_call.1} parent=1 // pred_check
      _
    $region3: #{tpu_custom_call.1} parent=1 // pred_check_branch
      %12 = sbr.rel (0) target = $region5
    $region4: #{tpu_custom_call.1} parent=1 // pred_region
      %14 = vsyncadd [#allocation4], 0
      %s16 = sshll.u32 %s0, 4
      %s17 = int_to_ptr.hbm [resolvable:$true] %s16
      %s18 = sshll.u32 [#allocation3], 4
      %s19 = int_to_ptr.vmem [resolvable:$true] %s18
      %21 = dma.hbm_to_vmem [thread:$0]  %s17, 128, %s19, [#allocation4]
    $region5: #{tpu_custom_call.1} parent=1 // pred_fallthru
      _
    // Predicated region
    $region6: #{tpu_custom_call.1} parent=1 // pred_check
      _
    $region7: #{tpu_custom_call.1} parent=1 // pred_check_branch
      %23 = sbr.rel (0) target = $region9
    $region8: #{tpu_custom_call.1} parent=1 // pred_region
      %25 = vsyncadd [#allocation7], 0
      %s26 = sshll.u32 %s1, 4
      %s27 = int_to_ptr.hbm [resolvable:$true] %s26
      %s28 = sshll.u32 [#allocation6], 4
      %s29 = int_to_ptr.vmem [resolvable:$true] %s28
      %34 = dma.hbm_to_vmem [thread:$0]  %s27, 4096, %s29, [#allocation7], 64, 64, 4
    $region9: #{tpu_custom_call.1} parent=1 // pred_fallthru
      _
    // Predicated region
    $region10: #{tpu_custom_call.1} parent=1 // pred_check
      _
    $region11: #{tpu_custom_call.1} parent=1 // pred_check_branch
      %36 = sbr.rel (0) target = $region13
    $region12: #{tpu_custom_call.1} parent=1 // pred_region
      %38 = vsyncadd [#allocation7], 0
      %s39 = sshll.u32 %s2, 4
      %s40 = int_to_ptr.hbm [resolvable:$true] %s39
      %s41 = sshll.u32 [#allocation8], 4
      %s42 = int_to_ptr.vmem [resolvable:$true] %s41
      %47 = dma.hbm_to_vmem [thread:$0]  %s40, 64, %s42, [#allocation7], 16, 16, 1
    $region13: #{tpu_custom_call.1} parent=1 // pred_fallthru
      _
    // Predicated region
    $region14: #{tpu_custom_call.1} parent=1 // pred_check
      _
    $region15: #{tpu_custom_call.1} parent=1 // pred_check_branch
      %49 = sbr.rel (0) target = $region17
    $region16: #{tpu_custom_call.1} parent=1 // pred_region
      %51 = dma.done [#allocation4], 128
    $region17: #{tpu_custom_call.1} parent=1 // pred_fallthru
      _
    // Predicated region
    $region18: #{tpu_custom_call.1} parent=1 // pred_check
      _
    $region19: #{tpu_custom_call.1} parent=1 // pred_check_branch
      %53 = sbr.rel (0) target = $region21
    $region20: #{tpu_custom_call.1} parent=1 // pred_region
      %55 = dma.done [#allocation7], 4096
    $region21: #{tpu_custom_call.1} parent=1 // pred_fallthru
      _
    // Predicated region
    $region22: #{tpu_custom_call.1} parent=1 // pred_check
      _
    $region23: #{tpu_custom_call.1} parent=1 // pred_check_branch
      %57 = sbr.rel (0) target = $region25
    $region24: #{tpu_custom_call.1} parent=1 // pred_region
      %59 = dma.done [#allocation7], 64
    $region25: #{tpu_custom_call.1} parent=1 // pred_fallthru
      _
    %vm61 = vcmask 1043768
    %62 = vst.msk [vmem:[#allocation2] sm:$0xf] %vm61, 0
    %v63 = vld [vmem:[#allocation3] sm:$0xff]
    %v64 = vpack.c.bf16 %v63, %v63
    %vm65 = vcmask 314368
    %66 = vst.msk [vmem:[#allocation2] sm:$0xf] %vm65, %v64
    %v67 = vld [vmem:[#allocation2] sm:$0xf]
    %v68 = vld [vmem:[#allocation6] sm:$0xf]
    %v69 = vld [vmem:[#allocation6 + $0x4] sm:$0xf]
    %v70 = vld [vmem:[#allocation6 + $0x8] sm:$0xf]
    %v71 = vld [vmem:[#allocation6 + $0xc] sm:$0xf]
    %v72 = vld [vmem:[#allocation6 + $0x10] sm:$0xf]
    %v73 = vld [vmem:[#allocation6 + $0x14] sm:$0xf]
    %v74 = vld [vmem:[#allocation6 + $0x18] sm:$0xf]
    %v75 = vld [vmem:[#allocation6 + $0x1c] sm:$0xf]
    %v76 = vld [vmem:[#allocation6 + $0x20] sm:$0xf]
    %v77 = vld [vmem:[#allocation6 + $0x24] sm:$0xf]
    %v78 = vld [vmem:[#allocation6 + $0x28] sm:$0xf]
    %v79 = vld [vmem:[#allocation6 + $0x2c] sm:$0xf]
    %v80 = vld [vmem:[#allocation6 + $0x30] sm:$0xf]
    %v81 = vld [vmem:[#allocation6 + $0x34] sm:$0xf]
    %v82 = vld [vmem:[#allocation6 + $0x38] sm:$0xf]
    %v83 = vld [vmem:[#allocation6 + $0x3c] sm:$0xf]
    %v84 = vld [vmem:[#allocation8] sm:$0x1]
    %v86 = vperm.slane %v84, 0
    %v104 = vunpack.c.l.b16 %v68
    %v105 = vunpack.c.l.b16 %v69
    %v106 = vunpack.c.l.b16 %v70
    %v107 = vunpack.c.l.b16 %v71
    %v108 = vunpack.c.l.b16 %v72
    %v109 = vunpack.c.l.b16 %v73
    %v110 = vunpack.c.l.b16 %v74
    %v111 = vunpack.c.l.b16 %v75
    %v112 = vunpack.c.l.b16 %v76
    %v113 = vunpack.c.l.b16 %v77
    %v114 = vunpack.c.l.b16 %v78
    %v115 = vunpack.c.l.b16 %v79
    %v116 = vunpack.c.l.b16 %v80
    %v117 = vunpack.c.l.b16 %v81
    %v118 = vunpack.c.l.b16 %v82
    %v119 = vunpack.c.l.b16 %v83
    %v120 = vpack.c.b16 %v105, %v104
    %v121 = vpack.c.b16 %v107, %v106
    %v122 = vpack.c.b16 %v109, %v108
    %v123 = vpack.c.b16 %v111, %v110
    %v124 = vpack.c.b16 %v113, %v112
    %v125 = vpack.c.b16 %v115, %v114
    %v126 = vpack.c.b16 %v117, %v116
    %v127 = vpack.c.b16 %v119, %v118
    %136 = vmatpush.bf16.msra.mxu0 %v127
    %137 = vmatpush.bf16.msra.mxu0 %v126
    %138 = vmatpush.bf16.msra.mxu0 %v125
    %139 = vmatpush.bf16.msra.mxu0 %v124
    %140 = vmatpush.bf16.msra.mxu0 %v123
    %141 = vmatpush.bf16.msra.mxu0 %v122
    %142 = vmatpush.bf16.msra.mxu0 %v121
    %143 = vmatpush.bf16.msra.mxu0 %v120
    %144 = vmatmul.bf16.gmra.mxu0 %v67
    %v145 = vpop.f32.mrf.mxu0
    %v146 = vadd.f32 %v86, %v145
    %v147 = vpop.f32.mrf.mxu0
    %148 = vdwg.mxu0
    %v149 = vmax.f32 %v146, 0.0
    %v150 = vpack.c.bf16 %v149, %v149
    %s151 = scalar_lea.vmem [#allocation6], 64
    %v152 = vld [vmem:[%s151] sm:$0xf]
    %v153 = vld [vmem:[%s151 + $0x4] sm:$0xf]
    %v154 = vld [vmem:[%s151 + $0x8] sm:$0xf]
    %v155 = vld [vmem:[%s151 + $0xc] sm:$0xf]
    %v156 = vld [vmem:[%s151 + $0x10] sm:$0xf]
    %v157 = vld [vmem:[%s151 + $0x14] sm:$0xf]
    %v158 = vld [vmem:[%s151 + $0x18] sm:$0xf]
    %v159 = vld [vmem:[%s151 + $0x1c] sm:$0xf]
    %v160 = vld [vmem:[%s151 + $0x20] sm:$0xf]
    %v161 = vld [vmem:[%s151 + $0x24] sm:$0xf]
    %v162 = vld [vmem:[%s151 + $0x28] sm:$0xf]
    %v163 = vld [vmem:[%s151 + $0x2c] sm:$0xf]
    %v164 = vld [vmem:[%s151 + $0x30] sm:$0xf]
    %v165 = vld [vmem:[%s151 + $0x34] sm:$0xf]
    %v166 = vld [vmem:[%s151 + $0x38] sm:$0xf]
    %v167 = vld [vmem:[%s151 + $0x3c] sm:$0xf]
    %s168 = scalar_lea.vmem [#allocation8], 1
    %v169 = vld [vmem:[%s168] sm:$0x1]
    %v171 = vperm.slane %v169, 0
    %v189 = vunpack.c.l.b16 %v152
    %v190 = vunpack.c.l.b16 %v153
    %v191 = vunpack.c.l.b16 %v154
    %v192 = vunpack.c.l.b16 %v155
    %v193 = vunpack.c.l.b16 %v156
    %v194 = vunpack.c.l.b16 %v157
    %v195 = vunpack.c.l.b16 %v158
    %v196 = vunpack.c.l.b16 %v159
    %v197 = vunpack.c.l.b16 %v160
    %v198 = vunpack.c.l.b16 %v161
    %v199 = vunpack.c.l.b16 %v162
    %v200 = vunpack.c.l.b16 %v163
    %v201 = vunpack.c.l.b16 %v164
    %v202 = vunpack.c.l.b16 %v165
    %v203 = vunpack.c.l.b16 %v166
    %v204 = vunpack.c.l.b16 %v167
    %v205 = vpack.c.b16 %v190, %v189
    %v206 = vpack.c.b16 %v192, %v191
    %v207 = vpack.c.b16 %v194, %v193
    %v208 = vpack.c.b16 %v196, %v195
    %v209 = vpack.c.b16 %v198, %v197
    %v210 = vpack.c.b16 %v200, %v199
    %v211 = vpack.c.b16 %v202, %v201
    %v212 = vpack.c.b16 %v204, %v203
    %221 = vmatpush.bf16.msra.mxu0 %v212
    %222 = vmatpush.bf16.msra.mxu0 %v211
    %223 = vmatpush.bf16.msra.mxu0 %v210
    %224 = vmatpush.bf16.msra.mxu0 %v209
    %225 = vmatpush.bf16.msra.mxu0 %v208
    %226 = vmatpush.bf16.msra.mxu0 %v207
    %227 = vmatpush.bf16.msra.mxu0 %v206
    %228 = vmatpush.bf16.msra.mxu0 %v205
    %229 = vmatmul.bf16.gmra.mxu0 %v150
    %v230 = vpop.f32.mrf.mxu0
    %v231 = vadd.f32 %v171, %v230
    %v232 = vpop.f32.mrf.mxu0
    %233 = vdwg.mxu0
    %v234 = vmax.f32 %v231, 0.0
    %v235 = vpack.c.bf16 %v234, %v234
    %s236 = scalar_lea.vmem [#allocation6], 128
    %v237 = vld [vmem:[%s236] sm:$0xf]
    %v238 = vld [vmem:[%s236 + $0x4] sm:$0xf]
    %v239 = vld [vmem:[%s236 + $0x8] sm:$0xf]
    %v240 = vld [vmem:[%s236 + $0xc] sm:$0xf]
    %v241 = vld [vmem:[%s236 + $0x10] sm:$0xf]
    %v242 = vld [vmem:[%s236 + $0x14] sm:$0xf]
    %v243 = vld [vmem:[%s236 + $0x18] sm:$0xf]
    %v244 = vld [vmem:[%s236 + $0x1c] sm:$0xf]
    %v245 = vld [vmem:[%s236 + $0x20] sm:$0xf]
    %v246 = vld [vmem:[%s236 + $0x24] sm:$0xf]
    %v247 = vld [vmem:[%s236 + $0x28] sm:$0xf]
    %v248 = vld [vmem:[%s236 + $0x2c] sm:$0xf]
    %v249 = vld [vmem:[%s236 + $0x30] sm:$0xf]
    %v250 = vld [vmem:[%s236 + $0x34] sm:$0xf]
    %v251 = vld [vmem:[%s236 + $0x38] sm:$0xf]
    %v252 = vld [vmem:[%s236 + $0x3c] sm:$0xf]
    %s253 = scalar_lea.vmem [#allocation8], 2
    %v254 = vld [vmem:[%s253] sm:$0x1]
    %v256 = vperm.slane %v254, 0
    %v274 = vunpack.c.l.b16 %v237
    %v275 = vunpack.c.l.b16 %v238
    %v276 = vunpack.c.l.b16 %v239
    %v277 = vunpack.c.l.b16 %v240
    %v278 = vunpack.c.l.b16 %v241
    %v279 = vunpack.c.l.b16 %v242
    %v280 = vunpack.c.l.b16 %v243
    %v281 = vunpack.c.l.b16 %v244
    %v282 = vunpack.c.l.b16 %v245
    %v283 = vunpack.c.l.b16 %v246
    %v284 = vunpack.c.l.b16 %v247
    %v285 = vunpack.c.l.b16 %v248
    %v286 = vunpack.c.l.b16 %v249
    %v287 = vunpack.c.l.b16 %v250
    %v288 = vunpack.c.l.b16 %v251
    %v289 = vunpack.c.l.b16 %v252
    %v290 = vpack.c.b16 %v275, %v274
    %v291 = vpack.c.b16 %v277, %v276
    %v292 = vpack.c.b16 %v279, %v278
    %v293 = vpack.c.b16 %v281, %v280
    %v294 = vpack.c.b16 %v283, %v282
    %v295 = vpack.c.b16 %v285, %v284
    %v296 = vpack.c.b16 %v287, %v286
    %v297 = vpack.c.b16 %v289, %v288
    %306 = vmatpush.bf16.msra.mxu0 %v297
    %307 = vmatpush.bf16.msra.mxu0 %v296
    %308 = vmatpush.bf16.msra.mxu0 %v295
    %309 = vmatpush.bf16.msra.mxu0 %v294
    %310 = vmatpush.bf16.msra.mxu0 %v293
    %311 = vmatpush.bf16.msra.mxu0 %v292
    %312 = vmatpush.bf16.msra.mxu0 %v291
    %313 = vmatpush.bf16.msra.mxu0 %v290
    %314 = vmatmul.bf16.gmra.mxu0 %v235
    %v315 = vpop.f32.mrf.mxu0
    %v316 = vadd.f32 %v256, %v315
    %v317 = vpop.f32.mrf.mxu0
    %318 = vdwg.mxu0
    %v319 = vmax.f32 %v316, 0.0
    %v320 = vpack.c.bf16 %v319, %v319
    %s321 = scalar_lea.vmem [#allocation6], 192
    %v322 = vld [vmem:[%s321] sm:$0xf]
    %v323 = vld [vmem:[%s321 + $0x4] sm:$0xf]
    %v324 = vld [vmem:[%s321 + $0x8] sm:$0xf]
    %v325 = vld [vmem:[%s321 + $0xc] sm:$0xf]
    %v326 = vld [vmem:[%s321 + $0x10] sm:$0xf]
    %v327 = vld [vmem:[%s321 + $0x14] sm:$0xf]
    %v328 = vld [vmem:[%s321 + $0x18] sm:$0xf]
    %v329 = vld [vmem:[%s321 + $0x1c] sm:$0xf]
    %v330 = vld [vmem:[%s321 + $0x20] sm:$0xf]
    %v331 = vld [vmem:[%s321 + $0x24] sm:$0xf]
    %v332 = vld [vmem:[%s321 + $0x28] sm:$0xf]
    %v333 = vld [vmem:[%s321 + $0x2c] sm:$0xf]
    %v334 = vld [vmem:[%s321 + $0x30] sm:$0xf]
    %v335 = vld [vmem:[%s321 + $0x34] sm:$0xf]
    %v336 = vld [vmem:[%s321 + $0x38] sm:$0xf]
    %v337 = vld [vmem:[%s321 + $0x3c] sm:$0xf]
    %s338 = scalar_lea.vmem [#allocation8], 3
    %v339 = vld [vmem:[%s338] sm:$0x1]
    %v341 = vperm.slane %v339, 0
    %v359 = vunpack.c.l.b16 %v322
    %v360 = vunpack.c.l.b16 %v323
    %v361 = vunpack.c.l.b16 %v324
    %v362 = vunpack.c.l.b16 %v325
    %v363 = vunpack.c.l.b16 %v326
    %v364 = vunpack.c.l.b16 %v327
    %v365 = vunpack.c.l.b16 %v328
    %v366 = vunpack.c.l.b16 %v329
    %v367 = vunpack.c.l.b16 %v330
    %v368 = vunpack.c.l.b16 %v331
    %v369 = vunpack.c.l.b16 %v332
    %v370 = vunpack.c.l.b16 %v333
    %v371 = vunpack.c.l.b16 %v334
    %v372 = vunpack.c.l.b16 %v335
    %v373 = vunpack.c.l.b16 %v336
    %v374 = vunpack.c.l.b16 %v337
    %v375 = vpack.c.b16 %v360, %v359
    %v376 = vpack.c.b16 %v362, %v361
    %v377 = vpack.c.b16 %v364, %v363
    %v378 = vpack.c.b16 %v366, %v365
    %v379 = vpack.c.b16 %v368, %v367
    %v380 = vpack.c.b16 %v370, %v369
    %v381 = vpack.c.b16 %v372, %v371
    %v382 = vpack.c.b16 %v374, %v373
    %391 = vmatpush.bf16.msra.mxu0 %v382
    %392 = vmatpush.bf16.msra.mxu0 %v381
    %393 = vmatpush.bf16.msra.mxu0 %v380
    %394 = vmatpush.bf16.msra.mxu0 %v379
    %395 = vmatpush.bf16.msra.mxu0 %v378
    %396 = vmatpush.bf16.msra.mxu0 %v377
    %397 = vmatpush.bf16.msra.mxu0 %v376
    %398 = vmatpush.bf16.msra.mxu0 %v375
    %399 = vmatmul.bf16.gmra.mxu0 %v320
    %v400 = vpop.f32.mrf.mxu0
    %v401 = vadd.f32 %v341, %v400
    %v402 = vpop.f32.mrf.mxu0
    %403 = vdwg.mxu0
    %vm404 = vcmask 195584
    %405 = vst.msk [vmem:[#allocation9] sm:$0xff] %vm404, %v401
    // Predicated region
    $region26: #{tpu_custom_call.1} parent=1 // pred_check
      _
    $region27: #{tpu_custom_call.1} parent=1 // pred_check_branch
      %407 = sbr.rel (0) target = $region29
    $region28: #{tpu_custom_call.1} parent=1 // pred_region
      %409 = vsyncadd [#allocation5], 0
      %s411 = sshll.u32 [#allocation9], 4
      %s412 = int_to_ptr.vmem [resolvable:$true] %s411
      %s413 = sshll.u32 %s3, 4
      %s414 = int_to_ptr.hbm [resolvable:$true] %s413
      %416 = dma.vmem_to_hbm [thread:$0]  %s412, 128, %s414, [#allocation5]
    $region29: #{tpu_custom_call.1} parent=1 // pred_fallthru
      _
    // Predicated region
    $region30: #{tpu_custom_call.1} parent=1 // pred_check
      _
    $region31: #{tpu_custom_call.1} parent=1 // pred_check_branch
      %418 = sbr.rel (0) target = $region33
    $region32: #{tpu_custom_call.1} parent=1 // pred_region
      %420 = dma.done [#allocation5], 128
    $region33: #{tpu_custom_call.1} parent=1 // pred_fallthru
      _
    %421 = vsyncpa [#allocation4], 1
    %422 = vsyncpa [#allocation7], 1
    %423 = vsyncpa [#allocation5], 1

</llo_original>
